<compile_context>
chip_gen: v7x
topology: tpu7x:2x2x1
jax: 0.10.0
libtpu: 0.0.40
codegen_flags: <defaults>
</compile_context>

<pallas_src>
import jax
import jax.numpy as jnp
from jax.experimental import pallas as pl
from jax.experimental.pallas import tpu as pltpu


def _cdiv(a, b):
    return -(-a // b)


def _round_up(n, m):
    return _cdiv(n, m) * m


def _make_kernel(tm, tc, num_classes, mxu_dtype):
    """Fused fc1->relu->fc2->relu->fc_out->sigmoid over one (tm, F) batch tile."""

    def kernel(x_ref, w1_ref, b1_ref, w2_ref, b2_ref, w3_ref, b3_ref, o_ref):
        w1 = w1_ref[...]          # (F,  H1)  mxu_dtype
        b1 = b1_ref[...]          # (1,  H1)  f32
        w2 = w2_ref[...]          # (H1, H2)  mxu_dtype
        b2 = b2_ref[...]          # (1,  H2)  f32
        w3 = w3_ref[...]          # (C_pad, H2) f32
        b3 = b3_ref[...]          # (C_pad, 1)  f32

        # Statically-unrolled row chunks: bounds the live h1/h2 footprint at
        # large TM while keeping every slice static and aligned.
        for r in range(0, tm, tc):
            rows = min(tc, tm - r)
            # f32 stream -> MXU dtype cast on the VPU, under the streaming DMA.
            xb = x_ref[r:r + rows, :].astype(mxu_dtype)
            h1 = jnp.dot(xb, w1, preferred_element_type=jnp.float32) + b1
            h1 = jnp.maximum(h1, 0.0).astype(mxu_dtype)
            h2 = jnp.dot(h1, w2, preferred_element_type=jnp.float32) + b2
            h2 = jnp.maximum(h2, 0.0)
            # fc_out head, transposed (contract last dims == q @ k.T pattern):
            # result is (C_pad, rows) with the batch chunk on lanes.
            logits = jax.lax.dot_general(
                w3, h2, (((1,), (1,)), ((), ())),
                preferred_element_type=jnp.float32) + b3
            probs = jax.nn.sigmoid(logits)
            # Lane-dense store of the real classes only.
            o_ref[:, r:r + rows] = probs[:num_classes, :].astype(o_ref.dtype)

    return kernel


def nn_forward(x, params, *, block_batch=4096, row_chunk=512, use_bf16=True):
    """x: (B, input_size) float32.  params: dict from init_params()."""
    w1, b1 = params["w1"], params["b1"]
    w2, b2 = params["w2"], params["b2"]
    w3, b3 = params["w3"], params["b3"]

    B, F = x.shape
    H1 = w1.shape[1]
    H2 = w2.shape[1]
    C = w3.shape[1]
    C_pad = _round_up(C, 8)                     # full-sublane head for the MXU

    mxu_dtype = jnp.bfloat16 if use_bf16 else jnp.float32
    mxu_bytes = jnp.dtype(mxu_dtype).itemsize

    # Weights / biases: VMEM-resident; fc1/fc2 in MXU dtype, head kept in f32.
    w1c = w1.astype(mxu_dtype)                               # (F,  H1)
    b1c = b1.reshape(1, H1).astype(jnp.float32)              # (1,  H1)
    w2c = w2.astype(mxu_dtype)                               # (H1, H2)
    b2c = b2.reshape(1, H2).astype(jnp.float32)              # (1,  H2)
    w3c = jnp.zeros((C_pad, H2), jnp.float32).at[:C].set(w3.T.astype(jnp.float32))
    b3c = jnp.zeros((C_pad, 1), jnp.float32).at[:C].set(b3.reshape(C, 1).astype(jnp.float32))

    nbytes = lambda a: a.size * jnp.dtype(a.dtype).itemsize
    weight_bytes = sum(nbytes(a) for a in (w1c, b1c, w2c, b2c, w3c, b3c))

    def vmem_need(tm, tc):
        stream = 2 * tm * F * 4 + 2 * C * tm * 4             # double-buffered x in / out
        acts = tc * (F * mxu_bytes + H1 * (4 + mxu_bytes)
                     + H2 * (4 + mxu_bytes) + 2 * C_pad * 4)  # in-kernel intermediates
        return stream + weight_bytes + acts + (2 << 20)      # + headroom

    # --- batch tiling -------------------------------------------------------
    # Big tiles (>= 256 KiB x DMA) amortize per-grid-step overhead; cap near
    # B/8 so the grid keeps >= ~8 steps (v7x has 2 TCs); shrink if the VMEM
    # request would exceed ~24 MiB; re-balance so padding stays < 8 rows/tile.
    TM = max(8, min(_round_up(block_batch, 8), _round_up(_cdiv(B, 8), 8)))
    while TM > 8 and vmem_need(TM, min(TM, row_chunk)) > (24 << 20):
        TM = max(8, _round_up(TM // 2, 8))
    num_tiles = _cdiv(B, TM)
    TM = _round_up(_cdiv(B, num_tiles), 8)
    B_pad = num_tiles * TM
    TC = max(8, min(_round_up(row_chunk, 8), TM))

    if B_pad != B:
        # Remainder-only padding (< 8 rows per tile); x itself stays float32.
        x = jnp.pad(x, ((0, B_pad - B), (0, 0)))

    def resident(arr):
        # Full-array block with a constant index_map: DMA'd once, VMEM-resident.
        return pl.BlockSpec(arr.shape, lambda i: (0,) * arr.ndim)

    kernel = _make_kernel(TM, TC, C, mxu_dtype)

    flops = 2 * B_pad * (F * H1 + H1 * H2 + H2 * C_pad)
    transcendentals = B_pad * C_pad                           # sigmoid exp
    bytes_accessed = B_pad * F * 4 + weight_bytes + B_pad * C * 4
    vmem_limit = int(min(max(vmem_need(TM, TC), 4 << 20), 32 << 20))

    out = pl.pallas_call(
        kernel,
        out_shape=jax.ShapeDtypeStruct((num_tiles, C, TM), jnp.float32),
        grid_spec=pltpu.PrefetchScalarGridSpec(
            num_scalar_prefetch=0,
            grid=(num_tiles,),
            in_specs=[
                pl.BlockSpec((TM, F), lambda i: (i, 0)),      # streamed f32 batch tiles
                resident(w1c), resident(b1c),
                resident(w2c), resident(b2c),
                resident(w3c), resident(b3c),
            ],
            # Lane-dense output: (C, TM) block with the batch on lanes.
            out_specs=pl.BlockSpec((None, C, TM), lambda i: (i, 0, 0)),
        ),
        compiler_params=pltpu.CompilerParams(
            dimension_semantics=("parallel",),                # megacore on v7x
            vmem_limit_bytes=vmem_limit,
        ),
        cost_estimate=pl.CostEstimate(
            flops=flops,
            transcendentals=transcendentals,
            bytes_accessed=bytes_accessed,
        ),
    )(x, w1c, b1c, w2c, b2c, w3c, b3c)

    # (num_tiles, C, TM) -> (B, C); tiny compared with the x stream.
    return out.transpose(0, 2, 1).reshape(B_pad, C)[:B]


def init_params(key, input_size, hidden_size, num_classes):
    """Deterministic init mimicking PyTorch nn.Linear default U(-1/sqrt(fan_in), +)."""
    def linear(key, fan_in, fan_out):
        kw, kb = jax.random.split(key)
        bound = 1.0 / jnp.sqrt(fan_in)
        # stored as (fan_in, fan_out) so x @ W == x @ W_torch.T
        w = jax.random.uniform(kw, (fan_in, fan_out), jnp.float32, -bound, bound)
        b = jax.random.uniform(kb, (1, fan_out), jnp.float32, -bound, bound)
        return w, b

    k1, k2, k3 = jax.random.split(key, 3)
    w1, b1 = linear(k1, input_size, hidden_size[0])
    w2, b2 = linear(k2, hidden_size[0], hidden_size[1])
    w3, b3 = linear(k3, hidden_size[1], num_classes)
    return {"w1": w1, "b1": b1, "w2": w2, "b2": b2, "w3": w3, "b3": b3}


def nn_forward_ref(x, p, *, use_bf16=True):
    """Pure-JAX reference mirroring the kernel's mixed-precision choices."""
    mxu = jnp.bfloat16 if use_bf16 else jnp.float32
    h1 = jnp.dot(x.astype(mxu), p["w1"].astype(mxu),
                 preferred_element_type=jnp.float32) + p["b1"]
    h1 = jnp.maximum(h1, 0.0).astype(mxu)
    h2 = jnp.dot(h1, p["w2"].astype(mxu),
                 preferred_element_type=jnp.float32) + p["b2"]
    h2 = jnp.maximum(h2, 0.0)
    logits = jnp.dot(h2, p["w3"]) + p["b3"]          # f32 head, same math as kernel
    return jax.nn.sigmoid(logits)


def nn_forward_f32_ref(x, p):
    """Exact f32 reference matching the PyTorch module semantics."""
    h1 = jnp.maximum(x @ p["w1"] + p["b1"], 0.0)
    h2 = jnp.maximum(h1 @ p["w2"] + p["b2"], 0.0)
    return jax.nn.sigmoid(h2 @ p["w3"] + p["b3"])


if __name__ == "__main__":
    key = jax.random.PRNGKey(0)
    kx, kp, kx2, kx3 = jax.random.split(key, 4)

    # Small shapes consistent with the module: binary-classifier MLP.
    batch, input_size, hidden_size, num_classes = 8, 32, [64, 32], 1

    x = jax.random.normal(kx, (batch, input_size), jnp.float32)
    params = init_params(kp, input_size, hidden_size, num_classes)

    out = jax.block_until_ready(nn_forward(x, params))
    assert out.shape == (batch, num_classes)
    assert jnp.allclose(out, nn_forward_ref(x, params), atol=1e-3, rtol=1e-3), \
        "mismatch vs mixed-precision ref"
    assert jnp.allclose(out, nn_forward_f32_ref(x, params), atol=3e-2, rtol=3e-2), \
        "mismatch vs f32 reference"

    # Multi-tile path with remainder padding: 20 rows, 8-row tiles (grid of 3).
    x2 = jax.random.normal(kx2, (20, input_size), jnp.float32)
    out2 = jax.block_until_ready(nn_forward(x2, params, block_batch=8))
    assert out2.shape == (20, num_classes)
    assert jnp.allclose(out2, nn_forward_ref(x2, params), atol=1e-3, rtol=1e-3), \
        "mismatch on batch-tiled path"

    # num_classes > 1 path (padded lane-dense MXU head).
    params_mc = init_params(kp, input_size, hidden_size, 4)
    out3 = jax.block_until_ready(nn_forward(x, params_mc))
    assert out3.shape == (batch, 4)
    assert jnp.allclose(out3, nn_forward_ref(x, params_mc), atol=1e-3, rtol=1e-3), \
        "mismatch on multi-class path"

    # Pipelined large-batch path: grid of 8 x 1024-row tiles, 2 row-chunks each.
    x3 = jax.random.normal(kx3, (8192, input_size), jnp.float32)
    out4 = jax.block_until_ready(nn_forward(x3, params))
    assert out4.shape == (8192, num_classes)
    assert jnp.allclose(out4, nn_forward_ref(x3, params), atol=1e-3, rtol=1e-3), \
        "mismatch on large-batch path"

    print("KERNEL_OK")
</pallas_src>

<mosaic_0001>
module attributes {stable_mosaic.version = 11 : i64} {
  func.func @kernel(%arg0: i32, %arg1: memref<8x32xf32, #tpu.memory_space<vmem>>, %arg2: memref<32x64xbf16, #tpu.memory_space<vmem>>, %arg3: memref<1x64xf32, #tpu.memory_space<vmem>>, %arg4: memref<64x32xbf16, #tpu.memory_space<vmem>>, %arg5: memref<1x32xf32, #tpu.memory_space<vmem>>, %arg6: memref<8x32xf32, #tpu.memory_space<vmem>>, %arg7: memref<8x1xf32, #tpu.memory_space<vmem>>, %arg8: memref<1x1x8xf32, #tpu.memory_space<vmem>>) attributes {dimension_semantics = [#tpu.dimension_semantics<parallel>], iteration_bounds = array<i64: 1>, scalar_prefetch = 0 : i64, scratch_operands = 0 : i64, tpu.core_type = #tpu.core_type<tc>, window_params = [{transform_indices = @transform_0, window_bounds = array<i64: 8, 32>}, {pipeline_mode = #tpu.pipeline_mode<synchronous>, transform_indices = @transform_1, window_bounds = array<i64: 32, 64>}, {pipeline_mode = #tpu.pipeline_mode<synchronous>, transform_indices = @transform_2, window_bounds = array<i64: 1, 64>}, {pipeline_mode = #tpu.pipeline_mode<synchronous>, transform_indices = @transform_3, window_bounds = array<i64: 64, 32>}, {pipeline_mode = #tpu.pipeline_mode<synchronous>, transform_indices = @transform_4, window_bounds = array<i64: 1, 32>}, {pipeline_mode = #tpu.pipeline_mode<synchronous>, transform_indices = @transform_5, window_bounds = array<i64: 8, 32>}, {pipeline_mode = #tpu.pipeline_mode<synchronous>, transform_indices = @transform_6, window_bounds = array<i64: 8, 1>}, {transform_indices = @transform_7, window_bounds = array<i64: 1, 1, 8>}]} {
    %c0 = arith.constant 0 : index
    %c0_0 = arith.constant 0 : index
    %0 = vector.load %arg2[%c0, %c0_0] : memref<32x64xbf16, #tpu.memory_space<vmem>>, vector<32x64xbf16>
    %c0_1 = arith.constant 0 : index
    %c0_2 = arith.constant 0 : index
    %1 = vector.load %arg3[%c0_1, %c0_2] : memref<1x64xf32, #tpu.memory_space<vmem>>, vector<1x64xf32>
    %c0_3 = arith.constant 0 : index
    %c0_4 = arith.constant 0 : index
    %2 = vector.load %arg4[%c0_3, %c0_4] : memref<64x32xbf16, #tpu.memory_space<vmem>>, vector<64x32xbf16>
    %c0_5 = arith.constant 0 : index
    %c0_6 = arith.constant 0 : index
    %3 = vector.load %arg5[%c0_5, %c0_6] : memref<1x32xf32, #tpu.memory_space<vmem>>, vector<1x32xf32>
    %c0_7 = arith.constant 0 : index
    %c0_8 = arith.constant 0 : index
    %4 = vector.load %arg6[%c0_7, %c0_8] : memref<8x32xf32, #tpu.memory_space<vmem>>, vector<8x32xf32>
    %c0_9 = arith.constant 0 : index
    %c0_10 = arith.constant 0 : index
    %5 = vector.load %arg7[%c0_9, %c0_10] : memref<8x1xf32, #tpu.memory_space<vmem>>, vector<8x1xf32>
    %c0_11 = arith.constant 0 : index
    %c0_12 = arith.constant 0 : index
    %6 = vector.load %arg1[%c0_11, %c0_12] : memref<8x32xf32, #tpu.memory_space<vmem>>, vector<8x32xf32>
    %7 = arith.truncf %6 : vector<8x32xf32> to vector<8x32xbf16>
    %cst = arith.constant dense<0.000000e+00> : vector<8x64xf32>
    %8 = tpu.matmul %7, %0, %cst {dimension_numbers = #tpu.dot_dimension_numbers<[1], [0], [0], [1], [0, 0, 1, 1], [], []>} : vector<8x32xbf16>, vector<32x64xbf16>, vector<8x64xf32> -> vector<8x64xf32>
    %9 = vector.broadcast %1 : vector<1x64xf32> to vector<8x64xf32>
    %10 = arith.addf %8, %9 : vector<8x64xf32>
    %cst_13 = arith.constant 0.000000e+00 : f32
    %11 = vector.broadcast %cst_13 : f32 to vector<8x64xf32>
    %12 = arith.maximumf %10, %11 : vector<8x64xf32>
    %13 = arith.truncf %12 : vector<8x64xf32> to vector<8x64xbf16>
    %cst_14 = arith.constant dense<0.000000e+00> : vector<8x32xf32>
    %14 = tpu.matmul %13, %2, %cst_14 {dimension_numbers = #tpu.dot_dimension_numbers<[1], [0], [0], [1], [0, 0, 1, 1], [], []>} : vector<8x64xbf16>, vector<64x32xbf16>, vector<8x32xf32> -> vector<8x32xf32>
    %15 = vector.broadcast %3 : vector<1x32xf32> to vector<8x32xf32>
    %16 = arith.addf %14, %15 : vector<8x32xf32>
    %cst_15 = arith.constant 0.000000e+00 : f32
    %17 = vector.broadcast %cst_15 : f32 to vector<8x32xf32>
    %18 = arith.maximumf %16, %17 : vector<8x32xf32>
    %cst_16 = arith.constant dense<0.000000e+00> : vector<8x8xf32>
    %19 = tpu.matmul %4, %18, %cst_16 {dimension_numbers = #tpu.dot_dimension_numbers<[1], [1], [0], [0], [0, 0, 1, 0], [], []>} : vector<8x32xf32>, vector<8x32xf32>, vector<8x8xf32> -> vector<8x8xf32>
    %20 = vector.broadcast %5 : vector<8x1xf32> to vector<8x8xf32>
    %21 = arith.addf %19, %20 : vector<8x8xf32>
    %22 = arith.negf %21 : vector<8x8xf32>
    %23 = math.exp %22 : vector<8x8xf32>
    %cst_17 = arith.constant 1.000000e+00 : f32
    %24 = vector.broadcast %cst_17 : f32 to vector<8x8xf32>
    %25 = arith.addf %24, %23 : vector<8x8xf32>
    %26 = arith.divf %24, %25 : vector<8x8xf32>
    %27 = vector.extract_strided_slice %26 {offsets = [0, 0], sizes = [1, 8], strides = [1, 1]} : vector<8x8xf32> to vector<1x8xf32>
    %c0_18 = arith.constant 0 : index
    %c0_19 = arith.constant 0 : index
    %c0_20 = arith.constant 0 : index
    %28 = vector.load %arg8[%c0_18, %c0_19, %c0_20] : memref<1x1x8xf32, #tpu.memory_space<vmem>>, vector<1x1x8xf32>
    %29 = vector.shape_cast %28 : vector<1x1x8xf32> to vector<1x8xf32>
    %30 = vector.shape_cast %27 : vector<1x8xf32> to vector<1x1x8xf32>
    tpu.vector_store %arg8[%c0_18, %c0_19, %c0_20], %30 {strides = array<i32>} : memref<1x1x8xf32, #tpu.memory_space<vmem>>, vector<1x1x8xf32>,
    return
  }
  func.func @transform_0(%arg0: i32) -> (i32, i32) {
    %c0_i32 = arith.constant 0 : i32
    %c0_i32_0 = arith.constant 0 : i32
    return %arg0, %c0_i32 : i32, i32
  }
  func.func @transform_1(%arg0: i32) -> (i32, i32) {
    %c0_i32 = arith.constant 0 : i32
    %c0_i32_0 = arith.constant 0 : i32
    %c0_i32_1 = arith.constant 0 : i32
    return %c0_i32, %c0_i32_0 : i32, i32
  }
  func.func @transform_2(%arg0: i32) -> (i32, i32) {
    %c0_i32 = arith.constant 0 : i32
    %c0_i32_0 = arith.constant 0 : i32
    %c0_i32_1 = arith.constant 0 : i32
    return %c0_i32, %c0_i32_0 : i32, i32
  }
  func.func @transform_3(%arg0: i32) -> (i32, i32) {
    %c0_i32 = arith.constant 0 : i32
    %c0_i32_0 = arith.constant 0 : i32
    %c0_i32_1 = arith.constant 0 : i32
    return %c0_i32, %c0_i32_0 : i32, i32
  }
  func.func @transform_4(%arg0: i32) -> (i32, i32) {
    %c0_i32 = arith.constant 0 : i32
    %c0_i32_0 = arith.constant 0 : i32
    %c0_i32_1 = arith.constant 0 : i32
    return %c0_i32, %c0_i32_0 : i32, i32
  }
  func.func @transform_5(%arg0: i32) -> (i32, i32) {
    %c0_i32 = arith.constant 0 : i32
    %c0_i32_0 = arith.constant 0 : i32
    %c0_i32_1 = arith.constant 0 : i32
    return %c0_i32, %c0_i32_0 : i32, i32
  }
  func.func @transform_6(%arg0: i32) -> (i32, i32) {
    %c0_i32 = arith.constant 0 : i32
    %c0_i32_0 = arith.constant 0 : i32
    %c0_i32_1 = arith.constant 0 : i32
    return %c0_i32, %c0_i32_0 : i32, i32
  }
  func.func @transform_7(%arg0: i32) -> (i32, i32, i32) {
    %c0_i32 = arith.constant 0 : i32
    %c0_i32_0 = arith.constant 0 : i32
    %c0_i32_1 = arith.constant 0 : i32
    return %arg0, %c0_i32, %c0_i32_0 : i32, i32, i32
  }
}

</mosaic_0001>

<llo_original>
// kernel: tpu_custom_call.1
$region0: #{tpu_custom_call.1}
  #allocation0 [shape = 'u32[]', space=smem, size = 0x4, offset = 0x4, fixed_abs, tag = 'smem constant byte address 0x4 - core index']
  #allocation1 [shape = 'u32[144,128]{1,0:T(1,128)}', space=vmem, size = 0x12000, scoped, tag = 'internal scratch']
  %s0 = inlined_call_operand.vmem [shape: f32[8,32], index: 0, kind: input, shape index: {}]
  %s1 = inlined_call_operand.vmem [shape: bf16[32,64], index: 1, kind: input, shape index: {}]
  %s2 = inlined_call_operand.vmem [shape: f32[1,64], index: 2, kind: input, shape index: {}]
  %s3 = inlined_call_operand.vmem [shape: bf16[64,32], index: 3, kind: input, shape index: {}]
  %s4 = inlined_call_operand.vmem [shape: f32[1,32], index: 4, kind: input, shape index: {}]
  %s5 = inlined_call_operand.vmem [shape: f32[8,32], index: 5, kind: input, shape index: {}]
  %s6 = inlined_call_operand.vmem [shape: f32[8,1], index: 6, kind: input, shape index: {}]
  %s7 = inlined_call_operand.hbm [shape: f32[1,1,8], index: 7, kind: output, shape index: {}]
  %s8 = sld [smem:[#allocation0]]
  $region38: #{tpu_custom_call.1} parent=0
    _
  %s10 = ssub.s32 1, %s8
  %s11 = scalar_select 0, %s10, %s8
  $region1: #{tpu_custom_call.1} parent=0
    #allocation2 [shape = 'u8[512]{0}', space=vmem, size = 0x400, scoped, tag = 'output window, operand 0, single buffered']
    #allocation3 [shape = 's32[1]{0}', space=sflag, size = 0x4, scoped, tag = 'scoped memory for tpu_custom_call.1']
    %12 = vsyncpa [#allocation3], 0
    // Predicated region
    $region2: #{tpu_custom_call.1} parent=1 // pred_check
      _
    $region3: #{tpu_custom_call.1} parent=1 // pred_check_branch
      %14 = sbr.rel (0) target = $region5
    $region4: #{tpu_custom_call.1} parent=1 // pred_region
      _
    $region5: #{tpu_custom_call.1} parent=1 // pred_fallthru
      _
    // Predicated region
    $region6: #{tpu_custom_call.1} parent=1 // pred_check
      _
    $region7: #{tpu_custom_call.1} parent=1 // pred_check_branch
      %16 = sbr.rel (0) target = $region9
    $region8: #{tpu_custom_call.1} parent=1 // pred_region
      _
    $region9: #{tpu_custom_call.1} parent=1 // pred_fallthru
      _
    // Predicated region
    $region10: #{tpu_custom_call.1} parent=1 // pred_check
      _
    $region11: #{tpu_custom_call.1} parent=1 // pred_check_branch
      %18 = sbr.rel (0) target = $region13
    $region12: #{tpu_custom_call.1} parent=1 // pred_region
      _
    $region13: #{tpu_custom_call.1} parent=1 // pred_fallthru
      _
    // Predicated region
    $region14: #{tpu_custom_call.1} parent=1 // pred_check
      _
    $region15: #{tpu_custom_call.1} parent=1 // pred_check_branch
      %20 = sbr.rel (0) target = $region17
    $region16: #{tpu_custom_call.1} parent=1 // pred_region
      _
    $region17: #{tpu_custom_call.1} parent=1 // pred_fallthru
      _
    // Predicated region
    $region18: #{tpu_custom_call.1} parent=1 // pred_check
      _
    $region19: #{tpu_custom_call.1} parent=1 // pred_check_branch
      %22 = sbr.rel (0) target = $region21
    $region20: #{tpu_custom_call.1} parent=1 // pred_region
      _
    $region21: #{tpu_custom_call.1} parent=1 // pred_fallthru
      _
    // Predicated region
    $region22: #{tpu_custom_call.1} parent=1 // pred_check
      _
    $region23: #{tpu_custom_call.1} parent=1 // pred_check_branch
      %24 = sbr.rel (0) target = $region25
    $region24: #{tpu_custom_call.1} parent=1 // pred_region
      _
    $region25: #{tpu_custom_call.1} parent=1 // pred_fallthru
      _
    // Predicated region
    $region26: #{tpu_custom_call.1} parent=1 // pred_check
      _
    $region27: #{tpu_custom_call.1} parent=1 // pred_check_branch
      %26 = sbr.rel (0) target = $region29
    $region28: #{tpu_custom_call.1} parent=1 // pred_region
      _
    $region29: #{tpu_custom_call.1} parent=1 // pred_fallthru
      _
    %v28 = vld [vmem:[%s1] sm:$0xf]
    %v29 = vld [vmem:[%s1 + $0x4] sm:$0xf]
    %v30 = vld [vmem:[%s1 + $0x8] sm:$0xf]
    %v31 = vld [vmem:[%s1 + $0xc] sm:$0xf]
    %v32 = vld [vmem:[%s2] sm:$0x1]
    %v33 = vld [vmem:[%s3] sm:$0xf]
    %v34 = vld [vmem:[%s3 + $0x4] sm:$0xf]
    %v35 = vld [vmem:[%s3 + $0x8] sm:$0xf]
    %v36 = vld [vmem:[%s3 + $0xc] sm:$0xf]
    %v37 = vld [vmem:[%s3 + $0x10] sm:$0xf]
    %v38 = vld [vmem:[%s3 + $0x14] sm:$0xf]
    %v39 = vld [vmem:[%s3 + $0x18] sm:$0xf]
    %v40 = vld [vmem:[%s3 + $0x1c] sm:$0xf]
    %v41 = vld [vmem:[%s4] sm:$0x1]
    %v42 = vld [vmem:[%s5] sm:$0xff]
    %v43 = vld [vmem:[%s6] sm:$0xff]
    %v44 = vld [vmem:[%s0] sm:$0xff]
    %v45 = vpack.c.bf16 %v44, %v44
    %v47 = vlaneseq
    %v48 = vshrl.u32 %v47, 7
    %v49 = vsub.s32 0, %v48
    %v50 = vrot.slane %v32, %v49
    %v56 = vunpack.c.l.b16 %v28
    %v57 = vunpack.c.l.b16 %v29
    %v58 = vunpack.c.l.b16 %v30
    %v59 = vunpack.c.l.b16 %v31
    %v60 = vpack.c.b16 %v57, %v56
    %v61 = vpack.c.b16 %v59, %v58
    %vm64 = vcmask 261120
    %v66 = vsel %vm64, %v45, 0
    %68 = vmatprep.subr.bf16.mxu0 0
    %69 = vmatpush1.bf16.msra.mxu0 %v60
    %70 = vmatprep.subr.bf16.mxu0 0
    %71 = vmatpush1.bf16.msra.mxu0 %v61
    %72 = vmatprep.subr.bf16.mxu0 0
    %73 = vmatpush1.bf16.msra.mxu0 0
    %74 = vmatprep.subr.bf16.mxu0 0
    %75 = vmatpush1.bf16.msra.mxu0 0
    %76 = vmatprep.subr.bf16.mxu0 0
    %77 = vmatpush1.bf16.msra.mxu0 0
    %78 = vmatprep.subr.bf16.mxu0 0
    %79 = vmatpush1.bf16.msra.mxu0 0
    %80 = vmatprep.subr.bf16.mxu0 0
    %81 = vmatpush1.bf16.msra.mxu0 0
    %82 = vmatprep.subr.bf16.mxu0 0
    %83 = vmatpush1.bf16.msra.mxu0 0
    %84 = vmatprep.subr.bf16.mxu0 0
    %85 = vmatpush1.bf16.msra.mxu0 0
    %86 = vmatprep.subr.bf16.mxu0 0
    %87 = vmatpush1.bf16.msra.mxu0 0
    %88 = vmatprep.subr.bf16.mxu0 0
    %89 = vmatpush1.bf16.msra.mxu0 0
    %90 = vmatprep.subr.bf16.mxu0 0
    %91 = vmatpush1.bf16.msra.mxu0 0
    %92 = vmatprep.subr.bf16.mxu0 0
    %93 = vmatpush1.bf16.msra.mxu0 0
    %94 = vmatprep.subr.bf16.mxu0 0
    %95 = vmatpush1.bf16.msra.mxu0 0
    %96 = vmatprep.subr.bf16.mxu0 0
    %97 = vmatpush1.bf16.msra.mxu0 0
    %98 = vmatprep.subr.bf16.mxu0 0
    %99 = vmatpush1.bf16.msra.mxu0 0
    %100 = vmatprep.mubr.bf16.mxu0 0
    %101 = vmatmul.mubr.bf16.gmra.mrb[0].mxu0 %v66
    %v102 = vpop.f32.mrb[0].mxu0
    %v103 = vadd.f32 %v50, %v102
    %v104 = vpop.f32.mrb[0].mxu0
    %v105 = vpop.f32.mrb[0].mxu0
    %v106 = vpop.f32.mrb[0].mxu0
    %107 = vdwg.mxu0
    %v108 = vmax.f32 %v103, 0.0
    %v109 = vpack.c.bf16 %v108, %v108
    %v111 = vlaneseq
    %v112 = vshrl.u32 %v111, 7
    %v113 = vsub.s32 0, %v112
    %v114 = vrot.slane %v41, %v113
    %v124 = vunpack.c.l.b16 %v33
    %v125 = vunpack.c.l.b16 %v34
    %v126 = vunpack.c.l.b16 %v35
    %v127 = vunpack.c.l.b16 %v36
    %v128 = vunpack.c.l.b16 %v37
    %v129 = vunpack.c.l.b16 %v38
    %v130 = vunpack.c.l.b16 %v39
    %v131 = vunpack.c.l.b16 %v40
    %v132 = vpack.c.b16 %v125, %v124
    %v133 = vpack.c.b16 %v127, %v126
    %v134 = vpack.c.b16 %v129, %v128
    %v135 = vpack.c.b16 %v131, %v130
    %vm140 = vcmask 523264
    %v142 = vsel %vm140, %v109, 0
    %144 = vmatprep.subr.bf16.mxu0 0
    %145 = vmatpush1.bf16.msra.mxu0 %v132
    %146 = vmatprep.subr.bf16.mxu0 0
    %147 = vmatpush1.bf16.msra.mxu0 %v133
    %148 = vmatprep.subr.bf16.mxu0 0
    %149 = vmatpush1.bf16.msra.mxu0 %v134
    %150 = vmatprep.subr.bf16.mxu0 0
    %151 = vmatpush1.bf16.msra.mxu0 %v135
    %152 = vmatprep.subr.bf16.mxu0 0
    %153 = vmatpush1.bf16.msra.mxu0 0
    %154 = vmatprep.subr.bf16.mxu0 0
    %155 = vmatpush1.bf16.msra.mxu0 0
    %156 = vmatprep.subr.bf16.mxu0 0
    %157 = vmatpush1.bf16.msra.mxu0 0
    %158 = vmatprep.subr.bf16.mxu0 0
    %159 = vmatpush1.bf16.msra.mxu0 0
    %160 = vmatprep.subr.bf16.mxu0 0
    %161 = vmatpush1.bf16.msra.mxu0 0
    %162 = vmatprep.subr.bf16.mxu0 0
    %163 = vmatpush1.bf16.msra.mxu0 0
    %164 = vmatprep.subr.bf16.mxu0 0
    %165 = vmatpush1.bf16.msra.mxu0 0
    %166 = vmatprep.subr.bf16.mxu0 0
    %167 = vmatpush1.bf16.msra.mxu0 0
    %168 = vmatprep.subr.bf16.mxu0 0
    %169 = vmatpush1.bf16.msra.mxu0 0
    %170 = vmatprep.subr.bf16.mxu0 0
    %171 = vmatpush1.bf16.msra.mxu0 0
    %172 = vmatprep.subr.bf16.mxu0 0
    %173 = vmatpush1.bf16.msra.mxu0 0
    %174 = vmatprep.subr.bf16.mxu0 0
    %175 = vmatpush1.bf16.msra.mxu0 0
    %176 = vmatprep.mubr.bf16.mxu0 0
    %177 = vmatmul.mubr.bf16.gmra.mrb[0].mxu0 %v142
    %v178 = vpop.f32.mrb[0].mxu0
    %v179 = vadd.f32 %v114, %v178
    %v180 = vpop.f32.mrb[0].mxu0
    %v181 = vpop.f32.mrb[0].mxu0
    %v182 = vpop.f32.mrb[0].mxu0
    %183 = vdwg.mxu0
    %v184 = vmax.f32 %v179, 0.0
    %186 = vset.pattern.permute.xlu0 0
    %187 = vperm.xlu0 %186, %v43
    %v188 = vpop.permute.xlu0 %187
    %v191 = vsel %vm64, %v42, 0
    %v194 = vsel %vm64, %v184, 0
    %196 = vmatprep.subr.mxu0 0.0
    %197 = vmatpush1.xpose.msra.mxu0 %v194
    %198 = vmatprep.subr.mxu0 0.0
    %199 = vmatpush1.xpose.msra.mxu0 0.0
    %200 = vmatprep.subr.mxu0 0.0
    %201 = vmatpush1.xpose.msra.mxu0 0.0
    %202 = vmatprep.subr.mxu0 0.0
    %203 = vmatpush1.xpose.msra.mxu0 0.0
    %204 = vmatprep.subr.mxu0 0.0
    %205 = vmatpush1.xpose.msra.mxu0 0.0
    %206 = vmatprep.subr.mxu0 0.0
    %207 = vmatpush1.xpose.msra.mxu0 0.0
    %208 = vmatprep.subr.mxu0 0.0
    %209 = vmatpush1.xpose.msra.mxu0 0.0
    %210 = vmatprep.subr.mxu0 0.0
    %211 = vmatpush1.xpose.msra.mxu0 0.0
    %212 = vmatprep.subr.mxu0 0.0
    %213 = vmatpush1.xpose.msra.mxu0 0.0
    %214 = vmatprep.subr.mxu0 0.0
    %215 = vmatpush1.xpose.msra.mxu0 0.0
    %216 = vmatprep.subr.mxu0 0.0
    %217 = vmatpush1.xpose.msra.mxu0 0.0
    %218 = vmatprep.subr.mxu0 0.0
    %219 = vmatpush1.xpose.msra.mxu0 0.0
    %220 = vmatprep.subr.mxu0 0.0
    %221 = vmatpush1.xpose.msra.mxu0 0.0
    %222 = vmatprep.subr.mxu0 0.0
    %223 = vmatpush1.xpose.msra.mxu0 0.0
    %224 = vmatprep.subr.mxu0 0.0
    %225 = vmatpush1.xpose.msra.mxu0 0.0
    %226 = vmatprep.subr.mxu0 0.0
    %227 = vmatpush1.xpose.msra.mxu0 0.0
    %228 = vmatprep.subr.mxu0 0.0
    %229 = vmatpush1.xpose.msra.mxu0 0.0
    %230 = vmatprep.subr.mxu0 0.0
    %231 = vmatpush1.xpose.msra.mxu0 0.0
    %232 = vmatprep.subr.mxu0 0.0
    %233 = vmatpush1.xpose.msra.mxu0 0.0
    %234 = vmatprep.subr.mxu0 0.0
    %235 = vmatpush1.xpose.msra.mxu0 0.0
    %236 = vmatprep.subr.mxu0 0.0
    %237 = vmatpush1.xpose.msra.mxu0 0.0
    %238 = vmatprep.subr.mxu0 0.0
    %239 = vmatpush1.xpose.msra.mxu0 0.0
    %240 = vmatprep.subr.mxu0 0.0
    %241 = vmatpush1.xpose.msra.mxu0 0.0
    %242 = vmatprep.subr.mxu0 0.0
    %243 = vmatpush1.xpose.msra.mxu0 0.0
    %244 = vmatprep.subr.mxu0 0.0
    %245 = vmatpush1.xpose.msra.mxu0 0.0
    %246 = vmatprep.subr.mxu0 0.0
    %247 = vmatpush1.xpose.msra.mxu0 0.0
    %248 = vmatprep.subr.mxu0 0.0
    %249 = vmatpush1.xpose.msra.mxu0 0.0
    %250 = vmatprep.subr.mxu0 0.0
    %251 = vmatpush1.xpose.msra.mxu0 0.0
    %252 = vmatprep.subr.mxu0 0.0
    %253 = vmatpush1.xpose.msra.mxu0 0.0
    %254 = vmatprep.subr.mxu0 0.0
    %255 = vmatpush1.xpose.msra.mxu0 0.0
    %256 = vmatprep.subr.mxu0 0.0
    %257 = vmatpush1.xpose.msra.mxu0 0.0
    %258 = vmatprep.subr.mxu0 0.0
    %259 = vmatpush1.xpose.msra.mxu0 0.0
    %260 = vmatprep.mubr.f32.mxu0 0.0
    %261 = vmatmul.mubr.f32.gmra.mrb[0].mxu0 %v191
    %v262 = vpop.f32.mrb[0].mxu0
    %v263 = vadd.f32 %v188, %v262
    %v264 = vpop.f32.mrb[0].mxu0
    %265 = vdwg.mxu0
    %v266 = vxor.u32 %v263, 2147483648
    %v267 = vmul.f32 %v266, 1.442695
    %v268 = vpow.pop %v267
    %v269 = vadd.f32 %v268, 1.0
    %v270 = vrcp.pop %v269
    %v271 = vmul.f32 1.0, %v270
    %vm272 = vcmask 57344
    %273 = vst.msk [vmem:[#allocation2] sm:$0x1] %vm272, %v271
    // Predicated region
    $region30: #{tpu_custom_call.1} parent=1 // pred_check
      _
    $region31: #{tpu_custom_call.1} parent=1 // pred_check_branch
      %275 = sbr.rel (0) target = $region33
    $region32: #{tpu_custom_call.1} parent=1 // pred_region
      %s277 = ssub.s32 16, 16
      %278 = vsyncadd [#allocation3], %s277
      %s280 = sshll.u32 [#allocation2], 4
      %s281 = int_to_ptr.vmem [resolvable:$true] %s280
      %283 = dma.vmem_to_hbm [thread:$0]  %s281, 16, %s7, [#allocation3]
    $region33: #{tpu_custom_call.1} parent=1 // pred_fallthru
      _
    // Predicated region
    $region34: #{tpu_custom_call.1} parent=1 // pred_check
      _
    $region35: #{tpu_custom_call.1} parent=1 // pred_check_branch
      %285 = sbr.rel (0) target = $region37
    $region36: #{tpu_custom_call.1} parent=1 // pred_region
      %286 = dma.done [#allocation3], 16
    $region37: #{tpu_custom_call.1} parent=1 // pred_fallthru
      _
    %287 = vsyncpa [#allocation3], 1

</llo_original>
